<compile_context>
chip_gen: v6e
topology: v6e:2x2x1
jax: 0.10.0
libtpu: 0.0.40
codegen_flags: <defaults>
</compile_context>

<pallas_src>
import functools

import jax
import jax.numpy as jnp
from jax.experimental import pallas as pl
from jax.experimental.pallas import tpu as pltpu


def _round_up(n, m):
    return ((n + m - 1) // m) * m


def _mlp_kernel(n_layer, x_ref, w_in_ref, b_in_ref, *rest):
    """One batch tile of the MLP forward.

    x_ref : (TB, ni_p) bf16         weights: bf16, stored (in, out)
    biases: f32, (1, n) / (L, 1, n) o_ref : (TB, no_p) f32, lane-dense
    """
    if n_layer > 0:
        w_h_ref, b_h_ref, w_out_ref, b_out_ref, o_ref = rest
    else:
        w_out_ref, b_out_ref, o_ref = rest

    def dense(act, w, b):
        # bf16 x bf16 matmul on the MXU with f32 accumulation; bias-add in f32.
        return jnp.dot(act.astype(jnp.bfloat16), w,
                       preferred_element_type=jnp.float32) + b

    y = jnp.tanh(dense(x_ref[...], w_in_ref[...], b_in_ref[...]))
    # n_layer is small & static -> unrolled at trace time (each layer has its own
    # weights/bias, so there is no hoistable broadcast to worry about).
    for i in range(n_layer):
        y = jnp.tanh(dense(y, w_h_ref[i], b_h_ref[i]))
    o_ref[...] = dense(y, w_out_ref[...], b_out_ref[...]).astype(o_ref.dtype)


def mlp_forward(x, w_in, b_in, w_h, b_h, w_out, b_out, *, block_batch=256):
    batch, n_input = x.shape
    n_nodes = w_in.shape[1]
    n_output = w_out.shape[1]
    n_layer = 0 if (w_h is None or w_h.shape[0] == 0) else int(w_h.shape[0])

    # ---- Padding: features -> multiples of 128 lanes; batch -> multiple of the tile.
    ni_p = _round_up(n_input, 128)
    nn_p = _round_up(n_nodes, 128)
    no_p = _round_up(n_output, 128)
    tb = min(block_batch, _round_up(batch, 16))     # multiple of 16 (bf16 sublanes)
    batch_p = _round_up(batch, tb)
    num_tiles = batch_p // tb

    f32, bf16 = jnp.float32, jnp.bfloat16
    x_p = jnp.pad(x.astype(f32),
                  ((0, batch_p - batch), (0, ni_p - n_input))).astype(bf16)
    w_in_p = jnp.pad(w_in, ((0, ni_p - n_input), (0, nn_p - n_nodes))).astype(bf16)
    b_in_p = jnp.pad(b_in, ((0, 0), (0, nn_p - n_nodes))).astype(f32)
    w_out_p = jnp.pad(w_out, ((0, nn_p - n_nodes), (0, no_p - n_output))).astype(bf16)
    b_out_p = jnp.pad(b_out, ((0, 0), (0, no_p - n_output))).astype(f32)

    inputs = [x_p, w_in_p, b_in_p]
    in_specs = [
        pl.BlockSpec((tb, ni_p), lambda i: (i, 0)),        # streamed per batch tile
        pl.BlockSpec((ni_p, nn_p), lambda i: (0, 0)),      # VMEM-resident
        pl.BlockSpec((1, nn_p), lambda i: (0, 0)),
    ]
    weight_bytes = (w_in_p.size + w_out_p.size) * 2 + (b_in_p.size + b_out_p.size) * 4
    if n_layer > 0:
        w_h_p = jnp.pad(
            w_h, ((0, 0), (0, nn_p - n_nodes), (0, nn_p - n_nodes))).astype(bf16)
        b_h_p = jnp.pad(b_h, ((0, 0), (0, 0), (0, nn_p - n_nodes))).astype(f32)
        inputs += [w_h_p, b_h_p]
        in_specs += [
            pl.BlockSpec((n_layer, nn_p, nn_p), lambda i: (0, 0, 0)),
            pl.BlockSpec((n_layer, 1, nn_p), lambda i: (0, 0, 0)),
        ]
        weight_bytes += w_h_p.size * 2 + b_h_p.size * 4
    inputs += [w_out_p, b_out_p]
    in_specs += [
        pl.BlockSpec((nn_p, no_p), lambda i: (0, 0)),
        pl.BlockSpec((1, no_p), lambda i: (0, 0)),
    ]

    # VMEM budget: resident weights + double-buffered x / out tiles (+2x slack),
    # clamped below v7x's 64 MiB physical VMEM.
    tile_bytes = 2 * (tb * ni_p * 2 + tb * no_p * 4)
    vmem_limit = int(min(max(2 * (weight_bytes + tile_bytes), 32 * 1024 * 1024),
                         60 * 1024 * 1024))

    flops = 2 * batch_p * (ni_p * nn_p + n_layer * nn_p * nn_p + nn_p * no_p)
    transcendentals = batch_p * nn_p * (n_layer + 1)
    bytes_accessed = x_p.size * 2 + weight_bytes + batch_p * no_p * 4

    out_p = pl.pallas_call(
        functools.partial(_mlp_kernel, n_layer),
        out_shape=jax.ShapeDtypeStruct((batch_p, no_p), jnp.float32),
        grid=(num_tiles,),
        in_specs=in_specs,
        out_specs=pl.BlockSpec((tb, no_p), lambda i: (i, 0)),
        compiler_params=pltpu.CompilerParams(
            dimension_semantics=("parallel",),   # batch tiles shard across TCs (v7x)
            vmem_limit_bytes=vmem_limit),
        cost_estimate=pl.CostEstimate(
            flops=int(flops),
            transcendentals=int(transcendentals),
            bytes_accessed=int(bytes_accessed)),
    )(*inputs)

    return out_p[:batch, :n_output]


def init_params(key, n_input, n_output, n_layer, n_nodes):
    """Deterministic init mirroring the PyTorch module:
    xavier_uniform_ for weights, standard normal for biases.
    Weights are stored transposed vs nn.Linear, i.e. (in, out)."""
    def xavier(key, fan_in, fan_out):
        bound = jnp.sqrt(6.0 / (fan_in + fan_out))
        return jax.random.uniform(key, (fan_in, fan_out), jnp.float32, -bound, bound)

    keys = jax.random.split(key, 4 + 2 * max(n_layer, 1))
    w_in = xavier(keys[0], n_input, n_nodes)
    b_in = jax.random.normal(keys[1], (1, n_nodes), jnp.float32)
    w_out = xavier(keys[2], n_nodes, n_output)
    b_out = jax.random.normal(keys[3], (1, n_output), jnp.float32)

    if n_layer > 0:
        w_h = jnp.stack(
            [xavier(keys[4 + 2 * i], n_nodes, n_nodes) for i in range(n_layer)])
        b_h = jnp.stack(
            [jax.random.normal(keys[5 + 2 * i], (1, n_nodes), jnp.float32)
             for i in range(n_layer)])
    else:
        w_h = jnp.zeros((0, n_nodes, n_nodes), jnp.float32)
        b_h = jnp.zeros((0, 1, n_nodes), jnp.float32)
    return w_in, b_in, w_h, b_h, w_out, b_out


def reference_forward_f32(x, w_in, b_in, w_h, b_h, w_out, b_out):
    """Exact module semantics in f32."""
    y = jnp.tanh(x @ w_in + b_in)
    for i in range(w_h.shape[0]):
        y = jnp.tanh(y @ w_h[i] + b_h[i])
    return y @ w_out + b_out


def reference_forward_bf16(x, w_in, b_in, w_h, b_h, w_out, b_out):
    """Same math as the kernel (bf16 matmul operands, f32 accumulation)."""
    def dense(a, w, b):
        return jnp.dot(a.astype(jnp.bfloat16), w.astype(jnp.bfloat16),
                       preferred_element_type=jnp.float32) + b
    y = jnp.tanh(dense(x, w_in, b_in))
    for i in range(w_h.shape[0]):
        y = jnp.tanh(dense(y, w_h[i], b_h[i]))
    return dense(y, w_out, b_out)


if __name__ == "__main__":
    # Small shapes consistent with the module's forward (batch of feature vectors).
    batch, n_input, n_output, n_layer, n_nodes = 8, 8, 4, 2, 32

    key = jax.random.PRNGKey(0)
    k_x, k_x2, k_p = jax.random.split(key, 3)
    x = jax.random.normal(k_x, (batch, n_input), jnp.float32)
    params = init_params(k_p, n_input, n_output, n_layer, n_nodes)

    out = jax.block_until_ready(mlp_forward(x, *params))
    assert out.shape == (batch, n_output)
    # Module semantics (f32 reference): loose tolerance due to bf16 matmul operands.
    ref_f32 = reference_forward_f32(x, *params)
    assert jnp.allclose(out, ref_f32, atol=5e-2, rtol=5e-2), "mismatch vs f32 reference"
    # Bit-level math check against a reference using the same bf16/f32 recipe.
    ref_bf16 = reference_forward_bf16(x, *params)
    assert jnp.allclose(out, ref_bf16, atol=2e-3, rtol=2e-3), "mismatch vs bf16 reference"

    # Larger, non-aligned batch exercises the multi-tile parallel grid + padding path.
    x_big = jax.random.normal(k_x2, (1000, n_input), jnp.float32)
    out_big = jax.block_until_ready(mlp_forward(x_big, *params))
    ref_big = reference_forward_bf16(x_big, *params)
    assert out_big.shape == (1000, n_output)
    assert jnp.allclose(out_big, ref_big, atol=2e-3, rtol=2e-3), "mismatch on tiled batch"

    print("KERNEL_OK")
</pallas_src>

<mosaic_0001>
module attributes {stable_mosaic.version = 11 : i64} {
  func.func @_mlp_kernel(%arg0: i32, %arg1: memref<16x128xbf16, #tpu.memory_space<vmem>>, %arg2: memref<128x128xbf16, #tpu.memory_space<vmem>>, %arg3: memref<1x128xf32, #tpu.memory_space<vmem>>, %arg4: memref<2x128x128xbf16, #tpu.memory_space<vmem>>, %arg5: memref<2x1x128xf32, #tpu.memory_space<vmem>>, %arg6: memref<128x128xbf16, #tpu.memory_space<vmem>>, %arg7: memref<1x128xf32, #tpu.memory_space<vmem>>, %arg8: memref<16x128xf32, #tpu.memory_space<vmem>>) attributes {dimension_semantics = [#tpu.dimension_semantics<parallel>], iteration_bounds = array<i64: 1>, scalar_prefetch = 0 : i64, scratch_operands = 0 : i64, tpu.core_type = #tpu.core_type<tc>, window_params = [{transform_indices = @transform_0, window_bounds = array<i64: 16, 128>}, {pipeline_mode = #tpu.pipeline_mode<synchronous>, transform_indices = @transform_1, window_bounds = array<i64: 128, 128>}, {pipeline_mode = #tpu.pipeline_mode<synchronous>, transform_indices = @transform_2, window_bounds = array<i64: 1, 128>}, {pipeline_mode = #tpu.pipeline_mode<synchronous>, transform_indices = @transform_3, window_bounds = array<i64: 2, 128, 128>}, {pipeline_mode = #tpu.pipeline_mode<synchronous>, transform_indices = @transform_4, window_bounds = array<i64: 2, 1, 128>}, {pipeline_mode = #tpu.pipeline_mode<synchronous>, transform_indices = @transform_5, window_bounds = array<i64: 128, 128>}, {pipeline_mode = #tpu.pipeline_mode<synchronous>, transform_indices = @transform_6, window_bounds = array<i64: 1, 128>}, {transform_indices = @transform_7, window_bounds = array<i64: 16, 128>}]} {
    %c0 = arith.constant 0 : index
    %c0_0 = arith.constant 0 : index
    %0 = vector.load %arg1[%c0, %c0_0] : memref<16x128xbf16, #tpu.memory_space<vmem>>, vector<16x128xbf16>
    %c0_1 = arith.constant 0 : index
    %c0_2 = arith.constant 0 : index
    %1 = vector.load %arg2[%c0_1, %c0_2] : memref<128x128xbf16, #tpu.memory_space<vmem>>, vector<128x128xbf16>
    %c0_3 = arith.constant 0 : index
    %c0_4 = arith.constant 0 : index
    %2 = vector.load %arg3[%c0_3, %c0_4] : memref<1x128xf32, #tpu.memory_space<vmem>>, vector<1x128xf32>
    %cst = arith.constant dense<0.000000e+00> : vector<16x128xf32>
    %3 = tpu.matmul %0, %1, %cst {dimension_numbers = #tpu.dot_dimension_numbers<[1], [0], [0], [1], [0, 0, 1, 1], [], []>} : vector<16x128xbf16>, vector<128x128xbf16>, vector<16x128xf32> -> vector<16x128xf32>
    %4 = vector.broadcast %2 : vector<1x128xf32> to vector<16x128xf32>
    %5 = arith.addf %3, %4 : vector<16x128xf32>
    %6 = math.tanh %5 : vector<16x128xf32>
    %c0_5 = arith.constant 0 : index
    %c0_6 = arith.constant 0 : index
    %c0_7 = arith.constant 0 : index
    %7 = vector.load %arg4[%c0_5, %c0_6, %c0_7] : memref<2x128x128xbf16, #tpu.memory_space<vmem>>, vector<1x128x128xbf16>
    %8 = vector.shape_cast %7 : vector<1x128x128xbf16> to vector<128x128xbf16>
    %c0_8 = arith.constant 0 : index
    %c0_9 = arith.constant 0 : index
    %c0_10 = arith.constant 0 : index
    %9 = vector.load %arg5[%c0_8, %c0_9, %c0_10] : memref<2x1x128xf32, #tpu.memory_space<vmem>>, vector<1x1x128xf32>
    %10 = vector.shape_cast %9 : vector<1x1x128xf32> to vector<1x128xf32>
    %11 = arith.truncf %6 : vector<16x128xf32> to vector<16x128xbf16>
    %cst_11 = arith.constant dense<0.000000e+00> : vector<16x128xf32>
    %12 = tpu.matmul %11, %8, %cst_11 {dimension_numbers = #tpu.dot_dimension_numbers<[1], [0], [0], [1], [0, 0, 1, 1], [], []>} : vector<16x128xbf16>, vector<128x128xbf16>, vector<16x128xf32> -> vector<16x128xf32>
    %13 = vector.broadcast %10 : vector<1x128xf32> to vector<16x128xf32>
    %14 = arith.addf %12, %13 : vector<16x128xf32>
    %15 = math.tanh %14 : vector<16x128xf32>
    %c1 = arith.constant 1 : index
    %c0_12 = arith.constant 0 : index
    %c0_13 = arith.constant 0 : index
    %16 = vector.load %arg4[%c1, %c0_12, %c0_13] : memref<2x128x128xbf16, #tpu.memory_space<vmem>>, vector<1x128x128xbf16>
    %17 = vector.shape_cast %16 : vector<1x128x128xbf16> to vector<128x128xbf16>
    %c1_14 = arith.constant 1 : index
    %c0_15 = arith.constant 0 : index
    %c0_16 = arith.constant 0 : index
    %18 = vector.load %arg5[%c1_14, %c0_15, %c0_16] : memref<2x1x128xf32, #tpu.memory_space<vmem>>, vector<1x1x128xf32>
    %19 = vector.shape_cast %18 : vector<1x1x128xf32> to vector<1x128xf32>
    %20 = arith.truncf %15 : vector<16x128xf32> to vector<16x128xbf16>
    %cst_17 = arith.constant dense<0.000000e+00> : vector<16x128xf32>
    %21 = tpu.matmul %20, %17, %cst_17 {dimension_numbers = #tpu.dot_dimension_numbers<[1], [0], [0], [1], [0, 0, 1, 1], [], []>} : vector<16x128xbf16>, vector<128x128xbf16>, vector<16x128xf32> -> vector<16x128xf32>
    %22 = vector.broadcast %19 : vector<1x128xf32> to vector<16x128xf32>
    %23 = arith.addf %21, %22 : vector<16x128xf32>
    %24 = math.tanh %23 : vector<16x128xf32>
    %c0_18 = arith.constant 0 : index
    %c0_19 = arith.constant 0 : index
    %25 = vector.load %arg6[%c0_18, %c0_19] : memref<128x128xbf16, #tpu.memory_space<vmem>>, vector<128x128xbf16>
    %c0_20 = arith.constant 0 : index
    %c0_21 = arith.constant 0 : index
    %26 = vector.load %arg7[%c0_20, %c0_21] : memref<1x128xf32, #tpu.memory_space<vmem>>, vector<1x128xf32>
    %27 = arith.truncf %24 : vector<16x128xf32> to vector<16x128xbf16>
    %cst_22 = arith.constant dense<0.000000e+00> : vector<16x128xf32>
    %28 = tpu.matmul %27, %25, %cst_22 {dimension_numbers = #tpu.dot_dimension_numbers<[1], [0], [0], [1], [0, 0, 1, 1], [], []>} : vector<16x128xbf16>, vector<128x128xbf16>, vector<16x128xf32> -> vector<16x128xf32>
    %29 = vector.broadcast %26 : vector<1x128xf32> to vector<16x128xf32>
    %30 = arith.addf %28, %29 : vector<16x128xf32>
    %c0_23 = arith.constant 0 : index
    %c0_24 = arith.constant 0 : index
    %31 = vector.load %arg8[%c0_23, %c0_24] : memref<16x128xf32, #tpu.memory_space<vmem>>, vector<16x128xf32>
    tpu.vector_store %arg8[%c0_23, %c0_24], %30 {strides = array<i32>} : memref<16x128xf32, #tpu.memory_space<vmem>>, vector<16x128xf32>,
    return
  }
  func.func @transform_0(%arg0: i32) -> (i32, i32) {
    %c0_i32 = arith.constant 0 : i32
    %c0_i32_0 = arith.constant 0 : i32
    return %arg0, %c0_i32 : i32, i32
  }
  func.func @transform_1(%arg0: i32) -> (i32, i32) {
    %c0_i32 = arith.constant 0 : i32
    %c0_i32_0 = arith.constant 0 : i32
    %c0_i32_1 = arith.constant 0 : i32
    return %c0_i32, %c0_i32_0 : i32, i32
  }
  func.func @transform_2(%arg0: i32) -> (i32, i32) {
    %c0_i32 = arith.constant 0 : i32
    %c0_i32_0 = arith.constant 0 : i32
    %c0_i32_1 = arith.constant 0 : i32
    return %c0_i32, %c0_i32_0 : i32, i32
  }
  func.func @transform_3(%arg0: i32) -> (i32, i32, i32) {
    %c0_i32 = arith.constant 0 : i32
    %c0_i32_0 = arith.constant 0 : i32
    %c0_i32_1 = arith.constant 0 : i32
    %c0_i32_2 = arith.constant 0 : i32
    return %c0_i32, %c0_i32_0, %c0_i32_1 : i32, i32, i32
  }
  func.func @transform_4(%arg0: i32) -> (i32, i32, i32) {
    %c0_i32 = arith.constant 0 : i32
    %c0_i32_0 = arith.constant 0 : i32
    %c0_i32_1 = arith.constant 0 : i32
    %c0_i32_2 = arith.constant 0 : i32
    return %c0_i32, %c0_i32_0, %c0_i32_1 : i32, i32, i32
  }
  func.func @transform_5(%arg0: i32) -> (i32, i32) {
    %c0_i32 = arith.constant 0 : i32
    %c0_i32_0 = arith.constant 0 : i32
    %c0_i32_1 = arith.constant 0 : i32
    return %c0_i32, %c0_i32_0 : i32, i32
  }
  func.func @transform_6(%arg0: i32) -> (i32, i32) {
    %c0_i32 = arith.constant 0 : i32
    %c0_i32_0 = arith.constant 0 : i32
    %c0_i32_1 = arith.constant 0 : i32
    return %c0_i32, %c0_i32_0 : i32, i32
  }
  func.func @transform_7(%arg0: i32) -> (i32, i32) {
    %c0_i32 = arith.constant 0 : i32
    %c0_i32_0 = arith.constant 0 : i32
    return %arg0, %c0_i32 : i32, i32
  }
}

</mosaic_0001>

<llo_original>
// kernel: tpu_custom_call.1
$region0: #{tpu_custom_call.1}
  #allocation0 [shape = 'u32[]', space=smem, size = 0x4, offset = 0x4, fixed_abs, tag = 'smem constant byte address 0x4 - core index']
  #allocation1 [shape = 'u32[144,128]{1,0:T(1,128)}', space=vmem, size = 0x12000, scoped, tag = 'internal scratch']
  %s0 = inlined_call_operand.hbm [shape: bf16[16,128], index: 0, kind: input, shape index: {}]
  %s1 = inlined_call_operand.hbm [shape: bf16[128,128], index: 1, kind: input, shape index: {}]
  %s2 = inlined_call_operand.vmem [shape: f32[1,128], index: 2, kind: input, shape index: {}]
  %s3 = inlined_call_operand.hbm [shape: bf16[2,128,128], index: 3, kind: input, shape index: {}]
  %s4 = inlined_call_operand.vmem [shape: f32[2,1,128], index: 4, kind: input, shape index: {}]
  %s5 = inlined_call_operand.hbm [shape: bf16[128,128], index: 5, kind: input, shape index: {}]
  %s6 = inlined_call_operand.vmem [shape: f32[1,128], index: 6, kind: input, shape index: {}]
  %s7 = inlined_call_operand.hbm [shape: f32[16,128], index: 7, kind: output, shape index: {}]
  %s8 = sld [smem:[#allocation0]]
  $region54: #{tpu_custom_call.1} parent=0
    _
  %s10 = ssub.s32 1, %s8
  %s11 = scalar_select 0, %s10, %s8
  $region1: #{tpu_custom_call.1} parent=0
    #allocation2 [shape = 'u8[4096]{0}', space=vmem, size = 0x1000, scoped, tag = 'input window, operand 0, single buffered']
    #allocation3 [shape = 's32[1]{0}', space=sflag, size = 0x4, scoped, tag = 'scoped memory for tpu_custom_call.1']
    #allocation4 [shape = 's32[1]{0}', space=sflag, size = 0x4, scoped, tag = 'scoped memory for tpu_custom_call.1']
    #allocation5 [shape = 'u8[32768]{0}', space=vmem, size = 0x8000, scoped, tag = 'input window, operand 1, single buffered']
    #allocation6 [shape = 's32[1]{0}', space=sflag, size = 0x4, scoped, tag = 'scoped memory for tpu_custom_call.1']
    #allocation7 [shape = 'u8[65536]{0}', space=vmem, size = 0x10000, scoped, tag = 'input window, operand 3, single buffered']
    #allocation8 [shape = 'u8[32768]{0}', space=vmem, size = 0x8000, scoped, tag = 'input window, operand 5, single buffered']
    #allocation9 [shape = 's32[1]{0}', space=sflag, size = 0x4, scoped, tag = 'scoped memory for tpu_custom_call.1']
    #allocation10 [shape = 'u8[8192]{0}', space=vmem, size = 0x2000, scoped, tag = 'output window, operand 0, single buffered']
    %12 = vsyncpa [#allocation3], 0
    %13 = vsyncpa [#allocation6], 0
    %14 = vsyncpa [#allocation9], 0
    %15 = vsyncpa [#allocation4], 0
    // Predicated region
    $region2: #{tpu_custom_call.1} parent=1 // pred_check
      _
    $region3: #{tpu_custom_call.1} parent=1 // pred_check_branch
      %17 = sbr.rel (0) target = $region5
    $region4: #{tpu_custom_call.1} parent=1 // pred_region
      %s19 = ssub.s32 128, 128
      %20 = vsyncadd [#allocation3], %s19
      %s21 = sshll.u32 [#allocation2], 4
      %s22 = int_to_ptr.vmem [resolvable:$true] %s21
      %27 = dma.hbm_to_vmem [thread:$0]  %s0, 128, %s22, [#allocation3], 64, 64, 4
    $region5: #{tpu_custom_call.1} parent=1 // pred_fallthru
      _
    // Predicated region
    $region6: #{tpu_custom_call.1} parent=1 // pred_check
      _
    $region7: #{tpu_custom_call.1} parent=1 // pred_check_branch
      %29 = sbr.rel (0) target = $region9
    $region8: #{tpu_custom_call.1} parent=1 // pred_region
      %s31 = ssub.s32 1024, 1024
      %32 = vsyncadd [#allocation6], %s31
      %s33 = sshll.u32 [#allocation5], 4
      %s34 = int_to_ptr.vmem [resolvable:$true] %s33
      %39 = dma.hbm_to_vmem [thread:$0]  %s1, 1024, %s34, [#allocation6], 64, 64, 4
    $region9: #{tpu_custom_call.1} parent=1 // pred_fallthru
      _
    // Predicated region
    $region10: #{tpu_custom_call.1} parent=1 // pred_check
      _
    $region11: #{tpu_custom_call.1} parent=1 // pred_check_branch
      %41 = sbr.rel (0) target = $region13
    $region12: #{tpu_custom_call.1} parent=1 // pred_region
      _
    $region13: #{tpu_custom_call.1} parent=1 // pred_fallthru
      _
    // Predicated region
    $region14: #{tpu_custom_call.1} parent=1 // pred_check
      _
    $region15: #{tpu_custom_call.1} parent=1 // pred_check_branch
      %43 = sbr.rel (0) target = $region17
    $region16: #{tpu_custom_call.1} parent=1 // pred_region
      %s45 = ssub.s32 2048, 2048
      %46 = vsyncadd [#allocation6], %s45
      %s47 = sshll.u32 [#allocation7], 4
      %s48 = int_to_ptr.vmem [resolvable:$true] %s47
      %53 = dma.hbm_to_vmem [thread:$0]  %s3, 2048, %s48, [#allocation6], 64, 64, 4
    $region17: #{tpu_custom_call.1} parent=1 // pred_fallthru
      _
    // Predicated region
    $region18: #{tpu_custom_call.1} parent=1 // pred_check
      _
    $region19: #{tpu_custom_call.1} parent=1 // pred_check_branch
      %55 = sbr.rel (0) target = $region21
    $region20: #{tpu_custom_call.1} parent=1 // pred_region
      _
    $region21: #{tpu_custom_call.1} parent=1 // pred_fallthru
      _
    // Predicated region
    $region22: #{tpu_custom_call.1} parent=1 // pred_check
      _
    $region23: #{tpu_custom_call.1} parent=1 // pred_check_branch
      %57 = sbr.rel (0) target = $region25
    $region24: #{tpu_custom_call.1} parent=1 // pred_region
      %s59 = ssub.s32 1024, 1024
      %60 = vsyncadd [#allocation9], %s59
      %s61 = sshll.u32 [#allocation8], 4
      %s62 = int_to_ptr.vmem [resolvable:$true] %s61
      %67 = dma.hbm_to_vmem [thread:$0]  %s5, 1024, %s62, [#allocation9], 64, 64, 4
    $region25: #{tpu_custom_call.1} parent=1 // pred_fallthru
      _
    // Predicated region
    $region26: #{tpu_custom_call.1} parent=1 // pred_check
      _
    $region27: #{tpu_custom_call.1} parent=1 // pred_check_branch
      %69 = sbr.rel (0) target = $region29
    $region28: #{tpu_custom_call.1} parent=1 // pred_region
      _
    $region29: #{tpu_custom_call.1} parent=1 // pred_fallthru
      _
    // Predicated region
    $region30: #{tpu_custom_call.1} parent=1 // pred_check
      _
    $region31: #{tpu_custom_call.1} parent=1 // pred_check_branch
      %71 = sbr.rel (0) target = $region33
    $region32: #{tpu_custom_call.1} parent=1 // pred_region
      %72 = dma.done [#allocation3], 128
    $region33: #{tpu_custom_call.1} parent=1 // pred_fallthru
      _
    // Predicated region
    $region34: #{tpu_custom_call.1} parent=1 // pred_check
      _
    $region35: #{tpu_custom_call.1} parent=1 // pred_check_branch
      %74 = sbr.rel (0) target = $region37
    $region36: #{tpu_custom_call.1} parent=1 // pred_region
      %75 = dma.done [#allocation6], 1024
    $region37: #{tpu_custom_call.1} parent=1 // pred_fallthru
      _
    // Predicated region
    $region38: #{tpu_custom_call.1} parent=1 // pred_check
      _
    $region39: #{tpu_custom_call.1} parent=1 // pred_check_branch
      %77 = sbr.rel (0) target = $region41
    $region40: #{tpu_custom_call.1} parent=1 // pred_region
      %78 = dma.done [#allocation6], 2048
    $region41: #{tpu_custom_call.1} parent=1 // pred_fallthru
      _
    // Predicated region
    $region42: #{tpu_custom_call.1} parent=1 // pred_check
      _
    $region43: #{tpu_custom_call.1} parent=1 // pred_check_branch
      %80 = sbr.rel (0) target = $region45
    $region44: #{tpu_custom_call.1} parent=1 // pred_region
      %81 = dma.done [#allocation9], 1024
    $region45: #{tpu_custom_call.1} parent=1 // pred_fallthru
      _
    %v83 = vld [vmem:[#allocation2] sm:$0xf]
    %v84 = vld [vmem:[#allocation2 + $0x4] sm:$0xf]
    %v85 = vld [vmem:[#allocation5] sm:$0xf]
    %v86 = vld [vmem:[#allocation5 + $0x4] sm:$0xf]
    %v87 = vld [vmem:[#allocation5 + $0x8] sm:$0xf]
    %v88 = vld [vmem:[#allocation5 + $0xc] sm:$0xf]
    %v89 = vld [vmem:[#allocation5 + $0x10] sm:$0xf]
    %v90 = vld [vmem:[#allocation5 + $0x14] sm:$0xf]
    %v91 = vld [vmem:[#allocation5 + $0x18] sm:$0xf]
    %v92 = vld [vmem:[#allocation5 + $0x1c] sm:$0xf]
    %v93 = vld [vmem:[#allocation5 + $0x20] sm:$0xf]
    %v94 = vld [vmem:[#allocation5 + $0x24] sm:$0xf]
    %v95 = vld [vmem:[#allocation5 + $0x28] sm:$0xf]
    %v96 = vld [vmem:[#allocation5 + $0x2c] sm:$0xf]
    %v97 = vld [vmem:[#allocation5 + $0x30] sm:$0xf]
    %v98 = vld [vmem:[#allocation5 + $0x34] sm:$0xf]
    %v99 = vld [vmem:[#allocation5 + $0x38] sm:$0xf]
    %v100 = vld [vmem:[#allocation5 + $0x3c] sm:$0xf]
    %v101 = vld [vmem:[%s2] sm:$0x1]
    %v103 = vlaneseq
    %v104 = vshrl.u32 %v103, 7
    %v105 = vsub.s32 0, %v104
    %v106 = vrot.slane %v101, %v105
    %v110 = vunpack.c.l.b16 %v83
    %v111 = vunpack.c.l.b16 %v84
    %v112 = vpack.c.b16 %v111, %v110
    %v130 = vunpack.c.l.b16 %v85
    %v131 = vunpack.c.l.b16 %v86
    %v132 = vunpack.c.l.b16 %v87
    %v133 = vunpack.c.l.b16 %v88
    %v134 = vunpack.c.l.b16 %v89
    %v135 = vunpack.c.l.b16 %v90
    %v136 = vunpack.c.l.b16 %v91
    %v137 = vunpack.c.l.b16 %v92
    %v138 = vunpack.c.l.b16 %v93
    %v139 = vunpack.c.l.b16 %v94
    %v140 = vunpack.c.l.b16 %v95
    %v141 = vunpack.c.l.b16 %v96
    %v142 = vunpack.c.l.b16 %v97
    %v143 = vunpack.c.l.b16 %v98
    %v144 = vunpack.c.l.b16 %v99
    %v145 = vunpack.c.l.b16 %v100
    %v146 = vpack.c.b16 %v131, %v130
    %v147 = vpack.c.b16 %v133, %v132
    %v148 = vpack.c.b16 %v135, %v134
    %v149 = vpack.c.b16 %v137, %v136
    %v150 = vpack.c.b16 %v139, %v138
    %v151 = vpack.c.b16 %v141, %v140
    %v152 = vpack.c.b16 %v143, %v142
    %v153 = vpack.c.b16 %v145, %v144
    %162 = vmatprep.subr.bf16.mxu0 0
    %163 = vmatpush1.bf16.msra.mxu0 %v153
    %164 = vmatprep.subr.bf16.mxu0 0
    %165 = vmatpush1.bf16.msra.mxu0 %v152
    %166 = vmatprep.subr.bf16.mxu0 0
    %167 = vmatpush1.bf16.msra.mxu0 %v151
    %168 = vmatprep.subr.bf16.mxu0 0
    %169 = vmatpush1.bf16.msra.mxu0 %v150
    %170 = vmatprep.subr.bf16.mxu0 0
    %171 = vmatpush1.bf16.msra.mxu0 %v149
    %172 = vmatprep.subr.bf16.mxu0 0
    %173 = vmatpush1.bf16.msra.mxu0 %v148
    %174 = vmatprep.subr.bf16.mxu0 0
    %175 = vmatpush1.bf16.msra.mxu0 %v147
    %176 = vmatprep.subr.bf16.mxu0 0
    %177 = vmatpush1.bf16.msra.mxu0 %v146
    %178 = vmatprep.subr.bf16.mxu0 0
    %179 = vmatpush2.bf16.msra.mxu0 0
    %180 = vmatprep.subr.bf16.mxu0 0
    %181 = vmatpush2.bf16.msra.mxu0 0
    %182 = vmatprep.subr.bf16.mxu0 0
    %183 = vmatpush2.bf16.msra.mxu0 0
    %184 = vmatprep.subr.bf16.mxu0 0
    %185 = vmatpush2.bf16.msra.mxu0 0
    %186 = vmatprep.subr.bf16.mxu0 0
    %187 = vmatpush2.bf16.msra.mxu0 0
    %188 = vmatprep.subr.bf16.mxu0 0
    %189 = vmatpush2.bf16.msra.mxu0 0
    %190 = vmatprep.subr.bf16.mxu0 0
    %191 = vmatpush2.bf16.msra.mxu0 0
    %192 = vmatprep.subr.bf16.mxu0 0
    %193 = vmatpush2.bf16.msra.mxu0 0
    %194 = vmatprep.mubr.bf16.mxu0 0
    %195 = vmatmul.mubr.bf16.gmra.mxu0 %v112
    %v196 = vpop.f32.mrf.mxu0
    %v197 = vadd.f32 %v106, %v196
    %v198 = vpop.f32.mrf.mxu0
    %v199 = vpop.f32.mrf.mxu0
    %v200 = vadd.f32 %v106, %v199
    %v201 = vpop.f32.mrf.mxu0
    %202 = vdwg.mxu0
    %v203 = vtanh.pop %v197
    %v204 = vtanh.pop %v200
    %v205 = vld [vmem:[#allocation7] sm:$0xf]
    %v206 = vld [vmem:[#allocation7 + $0x4] sm:$0xf]
    %v207 = vld [vmem:[#allocation7 + $0x8] sm:$0xf]
    %v208 = vld [vmem:[#allocation7 + $0xc] sm:$0xf]
    %v209 = vld [vmem:[#allocation7 + $0x10] sm:$0xf]
    %v210 = vld [vmem:[#allocation7 + $0x14] sm:$0xf]
    %v211 = vld [vmem:[#allocation7 + $0x18] sm:$0xf]
    %v212 = vld [vmem:[#allocation7 + $0x1c] sm:$0xf]
    %v213 = vld [vmem:[#allocation7 + $0x20] sm:$0xf]
    %v214 = vld [vmem:[#allocation7 + $0x24] sm:$0xf]
    %v215 = vld [vmem:[#allocation7 + $0x28] sm:$0xf]
    %v216 = vld [vmem:[#allocation7 + $0x2c] sm:$0xf]
    %v217 = vld [vmem:[#allocation7 + $0x30] sm:$0xf]
    %v218 = vld [vmem:[#allocation7 + $0x34] sm:$0xf]
    %v219 = vld [vmem:[#allocation7 + $0x38] sm:$0xf]
    %v220 = vld [vmem:[#allocation7 + $0x3c] sm:$0xf]
    %v221 = vld [vmem:[%s4] sm:$0x1]
    %v222 = vpack.c.bf16 %v204, %v203
    %v224 = vlaneseq
    %v225 = vshrl.u32 %v224, 7
    %v226 = vsub.s32 0, %v225
    %v227 = vrot.slane %v221, %v226
    %v245 = vunpack.c.l.b16 %v205
    %v246 = vunpack.c.l.b16 %v206
    %v247 = vunpack.c.l.b16 %v207
    %v248 = vunpack.c.l.b16 %v208
    %v249 = vunpack.c.l.b16 %v209
    %v250 = vunpack.c.l.b16 %v210
    %v251 = vunpack.c.l.b16 %v211
    %v252 = vunpack.c.l.b16 %v212
    %v253 = vunpack.c.l.b16 %v213
    %v254 = vunpack.c.l.b16 %v214
    %v255 = vunpack.c.l.b16 %v215
    %v256 = vunpack.c.l.b16 %v216
    %v257 = vunpack.c.l.b16 %v217
    %v258 = vunpack.c.l.b16 %v218
    %v259 = vunpack.c.l.b16 %v219
    %v260 = vunpack.c.l.b16 %v220
    %v261 = vpack.c.b16 %v246, %v245
    %v262 = vpack.c.b16 %v248, %v247
    %v263 = vpack.c.b16 %v250, %v249
    %v264 = vpack.c.b16 %v252, %v251
    %v265 = vpack.c.b16 %v254, %v253
    %v266 = vpack.c.b16 %v256, %v255
    %v267 = vpack.c.b16 %v258, %v257
    %v268 = vpack.c.b16 %v260, %v259
    %277 = vmatprep.subr.bf16.mxu0 0
    %278 = vmatpush1.bf16.msra.mxu0 %v268
    %279 = vmatprep.subr.bf16.mxu0 0
    %280 = vmatpush1.bf16.msra.mxu0 %v267
    %281 = vmatprep.subr.bf16.mxu0 0
    %282 = vmatpush1.bf16.msra.mxu0 %v266
    %283 = vmatprep.subr.bf16.mxu0 0
    %284 = vmatpush1.bf16.msra.mxu0 %v265
    %285 = vmatprep.subr.bf16.mxu0 0
    %286 = vmatpush1.bf16.msra.mxu0 %v264
    %287 = vmatprep.subr.bf16.mxu0 0
    %288 = vmatpush1.bf16.msra.mxu0 %v263
    %289 = vmatprep.subr.bf16.mxu0 0
    %290 = vmatpush1.bf16.msra.mxu0 %v262
    %291 = vmatprep.subr.bf16.mxu0 0
    %292 = vmatpush1.bf16.msra.mxu0 %v261
    %293 = vmatprep.subr.bf16.mxu0 0
    %294 = vmatpush2.bf16.msra.mxu0 0
    %295 = vmatprep.subr.bf16.mxu0 0
    %296 = vmatpush2.bf16.msra.mxu0 0
    %297 = vmatprep.subr.bf16.mxu0 0
    %298 = vmatpush2.bf16.msra.mxu0 0
    %299 = vmatprep.subr.bf16.mxu0 0
    %300 = vmatpush2.bf16.msra.mxu0 0
    %301 = vmatprep.subr.bf16.mxu0 0
    %302 = vmatpush2.bf16.msra.mxu0 0
    %303 = vmatprep.subr.bf16.mxu0 0
    %304 = vmatpush2.bf16.msra.mxu0 0
    %305 = vmatprep.subr.bf16.mxu0 0
    %306 = vmatpush2.bf16.msra.mxu0 0
    %307 = vmatprep.subr.bf16.mxu0 0
    %308 = vmatpush2.bf16.msra.mxu0 0
    %309 = vmatprep.mubr.bf16.mxu0 0
    %310 = vmatmul.mubr.bf16.gmra.mxu0 %v222
    %v311 = vpop.f32.mrf.mxu0
    %v312 = vadd.f32 %v227, %v311
    %v313 = vpop.f32.mrf.mxu0
    %v314 = vpop.f32.mrf.mxu0
    %v315 = vadd.f32 %v227, %v314
    %v316 = vpop.f32.mrf.mxu0
    %317 = vdwg.mxu0
    %v318 = vtanh.pop %v312
    %v319 = vtanh.pop %v315
    %s320 = scalar_lea.vmem [#allocation7], 64
    %v321 = vld [vmem:[%s320] sm:$0xf]
    %v322 = vld [vmem:[%s320 + $0x4] sm:$0xf]
    %v323 = vld [vmem:[%s320 + $0x8] sm:$0xf]
    %v324 = vld [vmem:[%s320 + $0xc] sm:$0xf]
    %v325 = vld [vmem:[%s320 + $0x10] sm:$0xf]
    %v326 = vld [vmem:[%s320 + $0x14] sm:$0xf]
    %v327 = vld [vmem:[%s320 + $0x18] sm:$0xf]
    %v328 = vld [vmem:[%s320 + $0x1c] sm:$0xf]
    %v329 = vld [vmem:[%s320 + $0x20] sm:$0xf]
    %v330 = vld [vmem:[%s320 + $0x24] sm:$0xf]
    %v331 = vld [vmem:[%s320 + $0x28] sm:$0xf]
    %v332 = vld [vmem:[%s320 + $0x2c] sm:$0xf]
    %v333 = vld [vmem:[%s320 + $0x30] sm:$0xf]
    %v334 = vld [vmem:[%s320 + $0x34] sm:$0xf]
    %v335 = vld [vmem:[%s320 + $0x38] sm:$0xf]
    %v336 = vld [vmem:[%s320 + $0x3c] sm:$0xf]
    %s337 = scalar_lea.vmem %s4, 1
    %v338 = vld [vmem:[%s337] sm:$0x1]
    %v339 = vpack.c.bf16 %v319, %v318
    %v341 = vlaneseq
    %v342 = vshrl.u32 %v341, 7
    %v343 = vsub.s32 0, %v342
    %v344 = vrot.slane %v338, %v343
    %v362 = vunpack.c.l.b16 %v321
    %v363 = vunpack.c.l.b16 %v322
    %v364 = vunpack.c.l.b16 %v323
    %v365 = vunpack.c.l.b16 %v324
    %v366 = vunpack.c.l.b16 %v325
    %v367 = vunpack.c.l.b16 %v326
    %v368 = vunpack.c.l.b16 %v327
    %v369 = vunpack.c.l.b16 %v328
    %v370 = vunpack.c.l.b16 %v329
    %v371 = vunpack.c.l.b16 %v330
    %v372 = vunpack.c.l.b16 %v331
    %v373 = vunpack.c.l.b16 %v332
    %v374 = vunpack.c.l.b16 %v333
    %v375 = vunpack.c.l.b16 %v334
    %v376 = vunpack.c.l.b16 %v335
    %v377 = vunpack.c.l.b16 %v336
    %v378 = vpack.c.b16 %v363, %v362
    %v379 = vpack.c.b16 %v365, %v364
    %v380 = vpack.c.b16 %v367, %v366
    %v381 = vpack.c.b16 %v369, %v368
    %v382 = vpack.c.b16 %v371, %v370
    %v383 = vpack.c.b16 %v373, %v372
    %v384 = vpack.c.b16 %v375, %v374
    %v385 = vpack.c.b16 %v377, %v376
    %394 = vmatprep.subr.bf16.mxu0 0
    %395 = vmatpush1.bf16.msra.mxu0 %v385
    %396 = vmatprep.subr.bf16.mxu0 0
    %397 = vmatpush1.bf16.msra.mxu0 %v384
    %398 = vmatprep.subr.bf16.mxu0 0
    %399 = vmatpush1.bf16.msra.mxu0 %v383
    %400 = vmatprep.subr.bf16.mxu0 0
    %401 = vmatpush1.bf16.msra.mxu0 %v382
    %402 = vmatprep.subr.bf16.mxu0 0
    %403 = vmatpush1.bf16.msra.mxu0 %v381
    %404 = vmatprep.subr.bf16.mxu0 0
    %405 = vmatpush1.bf16.msra.mxu0 %v380
    %406 = vmatprep.subr.bf16.mxu0 0
    %407 = vmatpush1.bf16.msra.mxu0 %v379
    %408 = vmatprep.subr.bf16.mxu0 0
    %409 = vmatpush1.bf16.msra.mxu0 %v378
    %410 = vmatprep.subr.bf16.mxu0 0
    %411 = vmatpush2.bf16.msra.mxu0 0
    %412 = vmatprep.subr.bf16.mxu0 0
    %413 = vmatpush2.bf16.msra.mxu0 0
    %414 = vmatprep.subr.bf16.mxu0 0
    %415 = vmatpush2.bf16.msra.mxu0 0
    %416 = vmatprep.subr.bf16.mxu0 0
    %417 = vmatpush2.bf16.msra.mxu0 0
    %418 = vmatprep.subr.bf16.mxu0 0
    %419 = vmatpush2.bf16.msra.mxu0 0
    %420 = vmatprep.subr.bf16.mxu0 0
    %421 = vmatpush2.bf16.msra.mxu0 0
    %422 = vmatprep.subr.bf16.mxu0 0
    %423 = vmatpush2.bf16.msra.mxu0 0
    %424 = vmatprep.subr.bf16.mxu0 0
    %425 = vmatpush2.bf16.msra.mxu0 0
    %426 = vmatprep.mubr.bf16.mxu0 0
    %427 = vmatmul.mubr.bf16.gmra.mxu0 %v339
    %v428 = vpop.f32.mrf.mxu0
    %v429 = vadd.f32 %v344, %v428
    %v430 = vpop.f32.mrf.mxu0
    %v431 = vpop.f32.mrf.mxu0
    %v432 = vadd.f32 %v344, %v431
    %v433 = vpop.f32.mrf.mxu0
    %434 = vdwg.mxu0
    %v435 = vtanh.pop %v429
    %v436 = vtanh.pop %v432
    %v437 = vld [vmem:[#allocation8] sm:$0xf]
    %v438 = vld [vmem:[#allocation8 + $0x4] sm:$0xf]
    %v439 = vld [vmem:[#allocation8 + $0x8] sm:$0xf]
    %v440 = vld [vmem:[#allocation8 + $0xc] sm:$0xf]
    %v441 = vld [vmem:[#allocation8 + $0x10] sm:$0xf]
    %v442 = vld [vmem:[#allocation8 + $0x14] sm:$0xf]
    %v443 = vld [vmem:[#allocation8 + $0x18] sm:$0xf]
    %v444 = vld [vmem:[#allocation8 + $0x1c] sm:$0xf]
    %v445 = vld [vmem:[#allocation8 + $0x20] sm:$0xf]
    %v446 = vld [vmem:[#allocation8 + $0x24] sm:$0xf]
    %v447 = vld [vmem:[#allocation8 + $0x28] sm:$0xf]
    %v448 = vld [vmem:[#allocation8 + $0x2c] sm:$0xf]
    %v449 = vld [vmem:[#allocation8 + $0x30] sm:$0xf]
    %v450 = vld [vmem:[#allocation8 + $0x34] sm:$0xf]
    %v451 = vld [vmem:[#allocation8 + $0x38] sm:$0xf]
    %v452 = vld [vmem:[#allocation8 + $0x3c] sm:$0xf]
    %v453 = vld [vmem:[%s6] sm:$0x1]
    %v454 = vpack.c.bf16 %v436, %v435
    %v456 = vlaneseq
    %v457 = vshrl.u32 %v456, 7
    %v458 = vsub.s32 0, %v457
    %v459 = vrot.slane %v453, %v458
    %v477 = vunpack.c.l.b16 %v437
    %v478 = vunpack.c.l.b16 %v438
    %v479 = vunpack.c.l.b16 %v439
    %v480 = vunpack.c.l.b16 %v440
    %v481 = vunpack.c.l.b16 %v441
    %v482 = vunpack.c.l.b16 %v442
    %v483 = vunpack.c.l.b16 %v443
    %v484 = vunpack.c.l.b16 %v444
    %v485 = vunpack.c.l.b16 %v445
    %v486 = vunpack.c.l.b16 %v446
    %v487 = vunpack.c.l.b16 %v447
    %v488 = vunpack.c.l.b16 %v448
    %v489 = vunpack.c.l.b16 %v449
    %v490 = vunpack.c.l.b16 %v450
    %v491 = vunpack.c.l.b16 %v451
    %v492 = vunpack.c.l.b16 %v452
    %v493 = vpack.c.b16 %v478, %v477
    %v494 = vpack.c.b16 %v480, %v479
    %v495 = vpack.c.b16 %v482, %v481
    %v496 = vpack.c.b16 %v484, %v483
    %v497 = vpack.c.b16 %v486, %v485
    %v498 = vpack.c.b16 %v488, %v487
    %v499 = vpack.c.b16 %v490, %v489
    %v500 = vpack.c.b16 %v492, %v491
    %509 = vmatprep.subr.bf16.mxu0 0
    %510 = vmatpush1.bf16.msra.mxu0 %v500
    %511 = vmatprep.subr.bf16.mxu0 0
    %512 = vmatpush1.bf16.msra.mxu0 %v499
    %513 = vmatprep.subr.bf16.mxu0 0
    %514 = vmatpush1.bf16.msra.mxu0 %v498
    %515 = vmatprep.subr.bf16.mxu0 0
    %516 = vmatpush1.bf16.msra.mxu0 %v497
    %517 = vmatprep.subr.bf16.mxu0 0
    %518 = vmatpush1.bf16.msra.mxu0 %v496
    %519 = vmatprep.subr.bf16.mxu0 0
    %520 = vmatpush1.bf16.msra.mxu0 %v495
    %521 = vmatprep.subr.bf16.mxu0 0
    %522 = vmatpush1.bf16.msra.mxu0 %v494
    %523 = vmatprep.subr.bf16.mxu0 0
    %524 = vmatpush1.bf16.msra.mxu0 %v493
    %525 = vmatprep.subr.bf16.mxu0 0
    %526 = vmatpush2.bf16.msra.mxu0 0
    %527 = vmatprep.subr.bf16.mxu0 0
    %528 = vmatpush2.bf16.msra.mxu0 0
    %529 = vmatprep.subr.bf16.mxu0 0
    %530 = vmatpush2.bf16.msra.mxu0 0
    %531 = vmatprep.subr.bf16.mxu0 0
    %532 = vmatpush2.bf16.msra.mxu0 0
    %533 = vmatprep.subr.bf16.mxu0 0
    %534 = vmatpush2.bf16.msra.mxu0 0
    %535 = vmatprep.subr.bf16.mxu0 0
    %536 = vmatpush2.bf16.msra.mxu0 0
    %537 = vmatprep.subr.bf16.mxu0 0
    %538 = vmatpush2.bf16.msra.mxu0 0
    %539 = vmatprep.subr.bf16.mxu0 0
    %540 = vmatpush2.bf16.msra.mxu0 0
    %541 = vmatprep.mubr.bf16.mxu0 0
    %542 = vmatmul.mubr.bf16.gmra.mxu0 %v454
    %v543 = vpop.f32.mrf.mxu0
    %v544 = vadd.f32 %v459, %v543
    %v545 = vpop.f32.mrf.mxu0
    %v546 = vpop.f32.mrf.mxu0
    %v547 = vadd.f32 %v459, %v546
    %v548 = vpop.f32.mrf.mxu0
    %549 = vdwg.mxu0
    %550 = vst [vmem:[#allocation10] sm:$0xff] %v544
    %551 = vst [vmem:[#allocation10 + $0x8] sm:$0xff] %v547
    // Predicated region
    $region46: #{tpu_custom_call.1} parent=1 // pred_check
      _
    $region47: #{tpu_custom_call.1} parent=1 // pred_check_branch
      %553 = sbr.rel (0) target = $region49
    $region48: #{tpu_custom_call.1} parent=1 // pred_region
      %s555 = ssub.s32 256, 256
      %556 = vsyncadd [#allocation4], %s555
      %s557 = sshll.u32 [#allocation10], 4
      %s558 = int_to_ptr.vmem [resolvable:$true] %s557
      %563 = dma.vmem_to_hbm [thread:$0]  %s558, 256, %s7, [#allocation4], 128, 128, 8
    $region49: #{tpu_custom_call.1} parent=1 // pred_fallthru
      _
    // Predicated region
    $region50: #{tpu_custom_call.1} parent=1 // pred_check
      _
    $region51: #{tpu_custom_call.1} parent=1 // pred_check_branch
      %565 = sbr.rel (0) target = $region53
    $region52: #{tpu_custom_call.1} parent=1 // pred_region
      %566 = dma.done [#allocation4], 256
    $region53: #{tpu_custom_call.1} parent=1 // pred_fallthru
      _
    %567 = vsyncpa [#allocation3], 1
    %568 = vsyncpa [#allocation6], 1
    %569 = vsyncpa [#allocation9], 1
    %570 = vsyncpa [#allocation4], 1

</llo_original>
